<compile_context>
chip_gen: v7x
topology: tpu7x:2x2x1
jax: 0.10.0
libtpu: 0.0.40
codegen_flags: <defaults>
</compile_context>

<pallas_src>
import jax
import jax.numpy as jnp
from jax.experimental import pallas as pl
from jax.experimental.pallas import tpu as pltpu

EPS = 1e-6


def _round_up(x, m):
    return ((x + m - 1) // m) * m


def _vmem_capacity_bytes():
    """Per-core VMEM capacity; conservative fallback (v7x = 64 MiB) if query fails."""
    try:
        return int(pltpu.get_tpu_info().vmem_capacity_bytes)
    except Exception:
        return 64 << 20


def _as_streamable(x):
    """Keep float inputs in their native dtype; promote bool/int minimally."""
    if jnp.issubdtype(x.dtype, jnp.floating):
        return x                         # f32 / bf16 / f16 stream as-is
    if x.dtype == jnp.bool_:
        return x.astype(jnp.bfloat16)    # exact for 0/1, half the bytes of f32
    # TODO(synk): stream int8 natively (packed VMEM tiles) once a caller needs it.
    return x.astype(jnp.float32)


def _choose_fold(B, N):
    """Split tiny batches into `fold` partial rows so grid[0] >= 2 (both v7x TCs)."""
    if B >= 16:
        return 1
    fold = 1
    while (B * fold < 16
           and N % (2 * fold) == 0
           and (N // (2 * fold)) % 128 == 0
           and N // (2 * fold) >= 1024):
        fold *= 2
    return fold


def _choose_tiles(B_rows, N_cols, bytes_per_elem_pair, vmem_capacity):
    """Pick (tb, tn): large lane tiles (HBM roofline), >= 2 row blocks when possible."""
    # Working set target: 2 pipeline buffers x (y_true + y_pred) x tb x tn.
    target_bytes = min(32 << 20, vmem_capacity // 4)   # 32 MiB v5e/v6e, 16 MiB v7x
    if B_rows >= 16:
        tb = min(256, _round_up(pl.cdiv(B_rows, 2), 8))  # guarantees >= 2 row blocks
    else:
        tb = B_rows
    max_block_elems = target_bytes // (2 * bytes_per_elem_pair)
    tn_cap = max(2048, ((max_block_elems // max(tb, 1)) // 128) * 128)
    tn = N_cols if N_cols <= tn_cap else tn_cap
    return tb, tn


def _clamp_tiles(B_rows, N_cols, tb, tn):
    """Sanitize (possibly caller-supplied) tiles: no tiny lane tiles, aligned rows."""
    tb = int(tb)
    tn = int(tn)
    if tb >= B_rows or B_rows < 8:
        tb = B_rows
    else:
        tb = max(8, (tb // 8) * 8)
    if tn >= N_cols:
        tn = N_cols
    else:
        tn = max(min(N_cols, 2048), (tn // 128) * 128)
        if tn >= N_cols:
            tn = N_cols
    return tb, tn


def _make_kernel(n_cols, tn, ragged, compute_dtype):
    """Kernel factory. Outputs are per-row partial sums num=sum(yt*yp), tot=sum(yt+yp)."""

    def accumulate(num_ref, tot_ref, yt, yp):
        # Elementwise math in compute_dtype (bf16 on bf16 inputs -> bf16 VPU on v6e/v7x),
        # reductions accumulate in f32.
        num_ref[...] += jnp.sum(yt * yp, axis=1, keepdims=True, dtype=jnp.float32)
        tot_ref[...] += jnp.sum(yt + yp, axis=1, keepdims=True, dtype=jnp.float32)

    def kernel(y_true_ref, y_pred_ref, num_ref, tot_ref):
        k = pl.program_id(1)

        @pl.when(k == 0)
        def _():
            num_ref[...] = jnp.zeros_like(num_ref)
            tot_ref[...] = jnp.zeros_like(tot_ref)

        if not ragged:
            yt = y_true_ref[...].astype(compute_dtype)
            yp = y_pred_ref[...].astype(compute_dtype)
            accumulate(num_ref, tot_ref, yt, yp)
        else:
            last = pl.num_programs(1) - 1

            # Interior tiles: unmasked fast path (no iota / compare / select VPU work).
            @pl.when(k < last)
            def _():
                yt = y_true_ref[...].astype(compute_dtype)
                yp = y_pred_ref[...].astype(compute_dtype)
                accumulate(num_ref, tot_ref, yt, yp)

            # Last (ragged) tile only: zero out lanes past N; zeros contribute nothing.
            @pl.when(k == last)
            def _():
                yt = y_true_ref[...].astype(compute_dtype)
                yp = y_pred_ref[...].astype(compute_dtype)
                lane = jax.lax.broadcasted_iota(jnp.int32, yt.shape, dimension=1)
                valid = (k * tn + lane) < n_cols
                yt = jnp.where(valid, yt, 0.0)
                yp = jnp.where(valid, yp, 0.0)
                accumulate(num_ref, tot_ref, yt, yp)

    return kernel


def soft_iou_loss(y_true, y_pred, sw, *, tb=None, tn=None, vmem_limit_bytes=None):
    """y_true, y_pred: (B, N); sw: (B, 1) (or (B,)) sample weights. Returns scalar loss."""
    B, N = y_true.shape
    assert y_pred.shape == (B, N)

    # Stream native floating dtypes (no wrapper f32 upcast); minimally promote bool/int.
    y_true = _as_streamable(y_true)
    y_pred = _as_streamable(y_pred)
    bytes_pair = y_true.dtype.itemsize + y_pred.dtype.itemsize
    compute_dtype = (jnp.bfloat16
                     if (y_true.dtype == jnp.bfloat16 and y_pred.dtype == jnp.bfloat16)
                     else jnp.float32)

    # Fold tiny batches into partial rows so the "parallel" row axis has >= 2 blocks.
    fold = _choose_fold(B, N)
    if fold > 1:
        y_true = y_true.reshape(B * fold, N // fold)   # contiguous reshape: free
        y_pred = y_pred.reshape(B * fold, N // fold)
    B_rows, N_cols = B * fold, N // fold

    capacity = _vmem_capacity_bytes()
    tb_auto, tn_auto = _choose_tiles(B_rows, N_cols, bytes_pair, capacity)
    tb = tb_auto if tb is None else tb
    tn = tn_auto if tn is None else tn
    tb, tn = _clamp_tiles(B_rows, N_cols, tb, tn)

    ragged = (tn < N_cols) and (N_cols % tn != 0)
    grid = (pl.cdiv(B_rows, tb), pl.cdiv(N_cols, tn))

    if vmem_limit_bytes is None:
        # Double-buffered input blocks + (tiny) double-buffered output blocks + headroom,
        # capped generation-aware (~48 MiB on v7x's 64 MiB VMEM, 56 MiB on v5e/v6e).
        need = 2 * tb * tn * bytes_pair + 2 * 2 * tb * 4
        ceiling = min(56 << 20, (capacity * 3) // 4)
        vmem_limit_bytes = max(16 << 20, min(need + (8 << 20), ceiling))

    num_out, tot_out = pl.pallas_call(
        _make_kernel(N_cols, tn, ragged, compute_dtype),
        out_shape=(jax.ShapeDtypeStruct((B_rows, 1), jnp.float32),
                   jax.ShapeDtypeStruct((B_rows, 1), jnp.float32)),
        grid_spec=pltpu.PrefetchScalarGridSpec(
            num_scalar_prefetch=0,
            grid=grid,
            in_specs=[
                pl.BlockSpec((tb, tn), lambda i, k: (i, k)),   # y_true tile
                pl.BlockSpec((tb, tn), lambda i, k: (i, k)),   # y_pred tile
            ],
            out_specs=[
                pl.BlockSpec((tb, 1), lambda i, k: (i, 0)),    # sum(yt*yp) per row
                pl.BlockSpec((tb, 1), lambda i, k: (i, 0)),    # sum(yt+yp) per row
            ],
        ),
        compiler_params=pltpu.CompilerParams(
            dimension_semantics=("parallel", "arbitrary"),
            vmem_limit_bytes=int(vmem_limit_bytes),
        ),
    )(y_true, y_pred)

    # Tiny JAX epilogue over B scalars: re-sum folded partials, form costs, masked mean.
    num = num_out.reshape(B, fold).sum(axis=1)
    tot = tot_out.reshape(B, fold).sum(axis=1)
    costs = 1.0 - num / ((tot - num) + EPS)

    sw_flat = sw.reshape(-1).astype(jnp.float32)
    # torch: masked_select(costs, sw.byte()) -> sw truncated to integer, nonzero = keep.
    # Note: torch .byte() wraps mod 256 (sw == 256.0 would be dropped there); not modeled.
    mask = (jnp.trunc(sw_flat) != 0).astype(jnp.float32)
    any_pos = jnp.any(sw_flat > 0)
    masked_mean = jnp.sum(costs * mask) / jnp.maximum(jnp.sum(mask), 1.0)
    plain_mean = jnp.mean(costs)
    return jnp.where(any_pos, masked_mean, plain_mean)


def soft_iou_loss_ref(y_true, y_pred, sw):
    """Pure-JAX reference mirroring the PyTorch forward."""
    y_true = y_true.astype(jnp.float32)
    y_pred = y_pred.astype(jnp.float32)
    num = jnp.sum(y_true * y_pred, axis=1)
    den = jnp.sum(y_true + y_pred - y_true * y_pred, axis=1) + EPS
    costs = (1.0 - num / den).reshape(-1)
    sw_flat = sw.reshape(-1).astype(jnp.float32)
    mask = (jnp.trunc(sw_flat) != 0).astype(jnp.float32)
    masked_mean = jnp.sum(costs * mask) / jnp.maximum(jnp.sum(mask), 1.0)
    plain_mean = jnp.mean(costs)
    return jnp.where(jnp.any(sw_flat > 0), masked_mean, plain_mean)


if __name__ == "__main__":
    key = jax.random.PRNGKey(0)
    k1, k2, k3, k4, k5, k6 = jax.random.split(key, 6)

    # Case 1: canonical small shapes (B rows = batch*seq, N = H*W), f32, mixed sw.
    B, H, W = 8, 16, 16
    N = H * W
    y_true = (jax.random.uniform(k1, (B, N)) > 0.5).astype(jnp.float32)
    y_pred = jax.random.uniform(k2, (B, N), dtype=jnp.float32)
    sw = jnp.array([1, 1, 0, 1, 0, 1, 1, 0], dtype=jnp.float32).reshape(B, 1)

    loss = jax.block_until_ready(soft_iou_loss(y_true, y_pred, sw))
    ref = soft_iou_loss_ref(y_true, y_pred, sw)
    assert jnp.allclose(loss, ref, rtol=1e-5, atol=1e-6), (loss, ref)

    # Case 2: ragged lane tiles (N=2500 with tn=2048 -> last-tile-only masking),
    # two row blocks with a clipped last block (B=20, tb=16), all-zero sw branch.
    B2, N2 = 20, 2500
    yt2 = (jax.random.uniform(k3, (B2, N2)) > 0.5).astype(jnp.float32)
    yp2 = jax.random.uniform(k4, (B2, N2), dtype=jnp.float32)
    sw2 = jnp.zeros((B2, 1), dtype=jnp.float32)

    loss2 = jax.block_until_ready(soft_iou_loss(yt2, yp2, sw2, tn=2048))
    ref2 = soft_iou_loss_ref(yt2, yp2, sw2)
    assert jnp.allclose(loss2, ref2, rtol=1e-5, atol=1e-6), (loss2, ref2)

    # Case 3: bf16 inputs stream natively (half the HBM bytes of f32), bf16 VPU math,
    # f32 reduction accumulators.
    yt3 = y_true.astype(jnp.bfloat16)
    yp3 = y_pred.astype(jnp.bfloat16)
    loss3 = jax.block_until_ready(soft_iou_loss(yt3, yp3, sw))
    ref3 = soft_iou_loss_ref(yt3, yp3, sw)
    assert jnp.allclose(loss3, ref3, rtol=2e-2, atol=2e-2), (loss3, ref3)

    # Case 4: tiny batch gets folded (B=4, N=4096 -> 16 partial rows x 1024 lanes)
    # so the "parallel" row axis has >= 2 blocks (both v7x TensorCores stream HBM).
    B4, N4 = 4, 4096
    yt4 = (jax.random.uniform(k5, (B4, N4)) > 0.5).astype(jnp.float32)
    yp4 = jax.random.uniform(k6, (B4, N4), dtype=jnp.float32)
    sw4 = jnp.array([1, 0, 1, 1], dtype=jnp.float32).reshape(B4, 1)

    loss4 = jax.block_until_ready(soft_iou_loss(yt4, yp4, sw4))
    ref4 = soft_iou_loss_ref(yt4, yp4, sw4)
    assert jnp.allclose(loss4, ref4, rtol=1e-5, atol=1e-6), (loss4, ref4)

    print("KERNEL_OK")
</pallas_src>

<mosaic_0001>
module attributes {stable_mosaic.version = 11 : i64} {
  func.func @kernel(%arg0: i32, %arg1: i32, %arg2: memref<8x256xf32, #tpu.memory_space<vmem>>, %arg3: memref<8x256xf32, #tpu.memory_space<vmem>>, %arg4: memref<8x1xf32, #tpu.memory_space<vmem>>, %arg5: memref<8x1xf32, #tpu.memory_space<vmem>>) attributes {dimension_semantics = [#tpu.dimension_semantics<parallel>, #tpu.dimension_semantics<arbitrary>], iteration_bounds = array<i64: 1, 1>, scalar_prefetch = 0 : i64, scratch_operands = 0 : i64, tpu.core_type = #tpu.core_type<tc>, window_params = [{transform_indices = @transform_0, window_bounds = array<i64: 8, 256>}, {transform_indices = @transform_1, window_bounds = array<i64: 8, 256>}, {transform_indices = @transform_2, window_bounds = array<i64: 8, 1>}, {transform_indices = @transform_3, window_bounds = array<i64: 8, 1>}]} {
    %c0_i32 = arith.constant 0 : i32
    %0 = arith.cmpi eq, %arg1, %c0_i32 : i32
    %1 = arith.extui %0 : i1 to i32
    %c0_i32_0 = arith.constant 0 : i32
    %2 = arith.cmpi ne, %1, %c0_i32_0 : i32
    scf.if %2 {
      %cst_13 = arith.constant 0.000000e+00 : f32
      %17 = vector.broadcast %cst_13 : f32 to vector<8x1xf32>
      %c0_14 = arith.constant 0 : index
      %c0_15 = arith.constant 0 : index
      %18 = vector.load %arg4[%c0_14, %c0_15] : memref<8x1xf32, #tpu.memory_space<vmem>>, vector<8x1xf32>
      tpu.vector_store %arg4[%c0_14, %c0_15], %17 {strides = array<i32>} : memref<8x1xf32, #tpu.memory_space<vmem>>, vector<8x1xf32>,
      %cst_16 = arith.constant 0.000000e+00 : f32
      %19 = vector.broadcast %cst_16 : f32 to vector<8x1xf32>
      %c0_17 = arith.constant 0 : index
      %c0_18 = arith.constant 0 : index
      %20 = vector.load %arg5[%c0_17, %c0_18] : memref<8x1xf32, #tpu.memory_space<vmem>>, vector<8x1xf32>
      tpu.vector_store %arg5[%c0_17, %c0_18], %19 {strides = array<i32>} : memref<8x1xf32, #tpu.memory_space<vmem>>, vector<8x1xf32>,
    } else {
    }
    %c0 = arith.constant 0 : index
    %c0_1 = arith.constant 0 : index
    %3 = vector.load %arg2[%c0, %c0_1] : memref<8x256xf32, #tpu.memory_space<vmem>>, vector<8x256xf32>
    %c0_2 = arith.constant 0 : index
    %c0_3 = arith.constant 0 : index
    %4 = vector.load %arg3[%c0_2, %c0_3] : memref<8x256xf32, #tpu.memory_space<vmem>>, vector<8x256xf32>
    %c0_4 = arith.constant 0 : index
    %c0_5 = arith.constant 0 : index
    %5 = vector.load %arg4[%c0_4, %c0_5] : memref<8x1xf32, #tpu.memory_space<vmem>>, vector<8x1xf32>
    %6 = arith.mulf %3, %4 : vector<8x256xf32>
    %cst = arith.constant dense<0.000000e+00> : vector<8xf32>
    %7 = vector.multi_reduction <add>, %6, %cst [1] : vector<8x256xf32> to vector<8xf32>
    %8 = vector.shape_cast %7 : vector<8xf32> to vector<8x1xf32>
    %9 = arith.addf %5, %8 : vector<8x1xf32>
    %c0_6 = arith.constant 0 : index
    %c0_7 = arith.constant 0 : index
    %10 = vector.load %arg4[%c0_6, %c0_7] : memref<8x1xf32, #tpu.memory_space<vmem>>, vector<8x1xf32>
    tpu.vector_store %arg4[%c0_6, %c0_7], %9 {strides = array<i32>} : memref<8x1xf32, #tpu.memory_space<vmem>>, vector<8x1xf32>,
    %c0_8 = arith.constant 0 : index
    %c0_9 = arith.constant 0 : index
    %11 = vector.load %arg5[%c0_8, %c0_9] : memref<8x1xf32, #tpu.memory_space<vmem>>, vector<8x1xf32>
    %12 = arith.addf %3, %4 : vector<8x256xf32>
    %cst_10 = arith.constant dense<0.000000e+00> : vector<8xf32>
    %13 = vector.multi_reduction <add>, %12, %cst_10 [1] : vector<8x256xf32> to vector<8xf32>
    %14 = vector.shape_cast %13 : vector<8xf32> to vector<8x1xf32>
    %15 = arith.addf %11, %14 : vector<8x1xf32>
    %c0_11 = arith.constant 0 : index
    %c0_12 = arith.constant 0 : index
    %16 = vector.load %arg5[%c0_11, %c0_12] : memref<8x1xf32, #tpu.memory_space<vmem>>, vector<8x1xf32>
    tpu.vector_store %arg5[%c0_11, %c0_12], %15 {strides = array<i32>} : memref<8x1xf32, #tpu.memory_space<vmem>>, vector<8x1xf32>,
    return
  }
  func.func @transform_0(%arg0: i32, %arg1: i32) -> (i32, i32) {
    %c0_i32 = arith.constant 0 : i32
    return %arg0, %arg1 : i32, i32
  }
  func.func @transform_1(%arg0: i32, %arg1: i32) -> (i32, i32) {
    %c0_i32 = arith.constant 0 : i32
    return %arg0, %arg1 : i32, i32
  }
  func.func @transform_2(%arg0: i32, %arg1: i32) -> (i32, i32) {
    %c0_i32 = arith.constant 0 : i32
    %c0_i32_0 = arith.constant 0 : i32
    return %arg0, %c0_i32 : i32, i32
  }
  func.func @transform_3(%arg0: i32, %arg1: i32) -> (i32, i32) {
    %c0_i32 = arith.constant 0 : i32
    %c0_i32_0 = arith.constant 0 : i32
    return %arg0, %c0_i32 : i32, i32
  }
}

</mosaic_0001>

<llo_original>
// kernel: tpu_custom_call.1
$region0: #{tpu_custom_call.1}
  #allocation0 [shape = 'u32[]', space=smem, size = 0x4, offset = 0x4, fixed_abs, tag = 'smem constant byte address 0x4 - core index']
  #allocation1 [shape = 'u32[144,128]{1,0:T(1,128)}', space=vmem, size = 0x12000, scoped, tag = 'internal scratch']
  %s0 = inlined_call_operand.hbm [shape: f32[8,256], index: 0, kind: input, shape index: {}]
  %s1 = inlined_call_operand.hbm [shape: f32[8,256], index: 1, kind: input, shape index: {}]
  %s2 = inlined_call_operand.vmem [shape: f32[8,1], index: 2, kind: output, shape index: {0}]
  %s3 = inlined_call_operand.vmem [shape: f32[8,1], index: 3, kind: output, shape index: {1}]
  %4 = xla_tuple %s2, %s3
  %s5 = sld [smem:[#allocation0]]
  $region38: #{tpu_custom_call.1} parent=0
    _
  %s7 = ssub.s32 1, %s5
  %s8 = scalar_select 0, %s7, %s5
  $region1: #{tpu_custom_call.1} parent=0
    #allocation2 [shape = 'u8[8192]{0}', space=vmem, size = 0x2000, scoped, tag = 'input window, operand 0, single buffered']
    #allocation3 [shape = 's32[1]{0}', space=sflag, size = 0x4, scoped, tag = 'scoped memory for tpu_custom_call.1']
    #allocation4 [shape = 'u8[8192]{0}', space=vmem, size = 0x2000, scoped, tag = 'input window, operand 1, single buffered']
    #allocation5 [shape = 's32[1]{0}', space=sflag, size = 0x4, scoped, tag = 'scoped memory for tpu_custom_call.1']
    %9 = vsyncpa [#allocation3], 0
    %10 = vsyncpa [#allocation5], 0
    // Predicated region
    $region2: #{tpu_custom_call.1} parent=1 // pred_check
      _
    $region3: #{tpu_custom_call.1} parent=1 // pred_check_branch
      %12 = sbr.rel (0) target = $region5
    $region4: #{tpu_custom_call.1} parent=1 // pred_region
      %s14 = ssub.s32 256, 256
      %15 = vsyncadd [#allocation3], %s14
      %s17 = sshll.u32 [#allocation2], 4
      %s18 = int_to_ptr.vmem [resolvable:$true] %s17
      %20 = dma.hbm_to_vmem [thread:$0]  %s0, 256, %s18, [#allocation3]
    $region5: #{tpu_custom_call.1} parent=1 // pred_fallthru
      _
    // Predicated region
    $region6: #{tpu_custom_call.1} parent=1 // pred_check
      _
    $region7: #{tpu_custom_call.1} parent=1 // pred_check_branch
      %22 = sbr.rel (0) target = $region9
    $region8: #{tpu_custom_call.1} parent=1 // pred_region
      %s24 = ssub.s32 256, 256
      %25 = vsyncadd [#allocation5], %s24
      %s27 = sshll.u32 [#allocation4], 4
      %s28 = int_to_ptr.vmem [resolvable:$true] %s27
      %30 = dma.hbm_to_vmem [thread:$0]  %s1, 256, %s28, [#allocation5]
    $region9: #{tpu_custom_call.1} parent=1 // pred_fallthru
      _
    // Predicated region
    $region10: #{tpu_custom_call.1} parent=1 // pred_check
      _
    $region11: #{tpu_custom_call.1} parent=1 // pred_check_branch
      %32 = sbr.rel (0) target = $region13
    $region12: #{tpu_custom_call.1} parent=1 // pred_region
      %33 = dma.done [#allocation3], 256
    $region13: #{tpu_custom_call.1} parent=1 // pred_fallthru
      _
    // Predicated region
    $region14: #{tpu_custom_call.1} parent=1 // pred_check
      _
    $region15: #{tpu_custom_call.1} parent=1 // pred_check_branch
      %35 = sbr.rel (0) target = $region17
    $region16: #{tpu_custom_call.1} parent=1 // pred_region
      %36 = dma.done [#allocation5], 256
    $region17: #{tpu_custom_call.1} parent=1 // pred_fallthru
      _
    %p37 = scmp.eq.s32.totalorder 0, 0
    // Predicated region
    $region18: #{tpu_custom_call.1} parent=1 // pred_check
      %p38 = pneg %p37
    $region19: #{tpu_custom_call.1} parent=1 // pred_check_branch
      %40 = sbr.rel (%p38) target = $region21
    $region20: #{tpu_custom_call.1} parent=1 // pred_region
      %vm41 = vcmask 7168
      %42 = vst.msk [vmem:[%s2] sm:$0xff] %vm41, 0.0
      %43 = vst.msk [vmem:[%s3] sm:$0xff] %vm41, 0.0
    $region21: #{tpu_custom_call.1} parent=1 // pred_fallthru
      _
    %v44 = vld [vmem:[#allocation2] sm:$0xff]
    %v45 = vld [vmem:[#allocation2 + $0x8] sm:$0xff]
    %v46 = vld [vmem:[#allocation4] sm:$0xff]
    %v47 = vld [vmem:[#allocation4 + $0x8] sm:$0xff]
    %v48 = vld [vmem:[%s2] sm:$0xff]
    %v49 = vmul.f32 %v44, %v46
    %v50 = vmul.f32 %v45, %v47
    %v51 = vadd.f32 %v49, %v50
    %52 = vadd.xlane.f32.xlu0 %v51
    %v53 = vpop.xlane.xlu0 %52
    %v54 = vadd.f32 %v48, %v53
    %vm55 = vcmask 7168
    %56 = vst.msk [vmem:[%s2] sm:$0xff] %vm55, %v54
    %v57 = vld [vmem:[%s3] sm:$0xff]
    %v58 = vadd.f32 %v44, %v46
    %v59 = vadd.f32 %v45, %v47
    %v60 = vadd.f32 %v58, %v59
    %61 = vadd.xlane.f32.xlu0 %v60
    %v62 = vpop.xlane.xlu0 %61
    %v63 = vadd.f32 %v57, %v62
    %64 = vst.msk [vmem:[%s3] sm:$0xff] %vm55, %v63
    // Predicated region
    $region22: #{tpu_custom_call.1} parent=1 // pred_check
      _
    $region23: #{tpu_custom_call.1} parent=1 // pred_check_branch
      %66 = sbr.rel (0) target = $region25
    $region24: #{tpu_custom_call.1} parent=1 // pred_region
      _
    $region25: #{tpu_custom_call.1} parent=1 // pred_fallthru
      _
    // Predicated region
    $region26: #{tpu_custom_call.1} parent=1 // pred_check
      _
    $region27: #{tpu_custom_call.1} parent=1 // pred_check_branch
      %68 = sbr.rel (0) target = $region29
    $region28: #{tpu_custom_call.1} parent=1 // pred_region
      _
    $region29: #{tpu_custom_call.1} parent=1 // pred_fallthru
      _
    // Predicated region
    $region30: #{tpu_custom_call.1} parent=1 // pred_check
      _
    $region31: #{tpu_custom_call.1} parent=1 // pred_check_branch
      %70 = sbr.rel (0) target = $region33
    $region32: #{tpu_custom_call.1} parent=1 // pred_region
      _
    $region33: #{tpu_custom_call.1} parent=1 // pred_fallthru
      _
    // Predicated region
    $region34: #{tpu_custom_call.1} parent=1 // pred_check
      _
    $region35: #{tpu_custom_call.1} parent=1 // pred_check_branch
      %72 = sbr.rel (0) target = $region37
    $region36: #{tpu_custom_call.1} parent=1 // pred_region
      _
    $region37: #{tpu_custom_call.1} parent=1 // pred_fallthru
      _
    %73 = vsyncpa [#allocation3], 1
    %74 = vsyncpa [#allocation5], 1

</llo_original>
